<compile_context>
chip_gen: v7x
topology: tpu7x:2x2x1
jax: 0.10.0
libtpu: 0.0.40
codegen_flags: <defaults>
</compile_context>

<pallas_src>
import functools

import jax
import jax.numpy as jnp
from jax.experimental import pallas as pl
from jax.experimental.pallas import tpu as pltpu


def _sdpa_kernel(q_ref, k_ref, v_ref, o_ref, w_ref, *, actual_sk, mxu_dtype):
    """One grid step: a (tb, tq, H) query tile against the full (tb, Sk_pad, H) K/V.

    Q arrives already scaled by 1/sqrt(hidden) and in the MXU input dtype.
    """
    q = q_ref[...]                              # (tb, tq, H)     bf16 (or f32)
    k = k_ref[...]                              # (tb, Sk_pad, H) bf16 (or f32)
    v = v_ref[...]                              # (tb, Sk_pad, H) bf16 (or f32)

    # scores = (Q/sqrt(H)) @ K^T : contract H with a batched dot_general so no
    # transposed K tile is materialized; accumulate in f32 on the MXU.
    scores = jax.lax.dot_general(
        q, k,
        dimension_numbers=(((2,), (2,)), ((0,), (0,))),
        preferred_element_type=jnp.float32)     # (tb, tq, Sk_pad) f32

    sk_pad = scores.shape[-1]
    if actual_sk < sk_pad:
        # Padded key columns -> -inf logits -> exactly zero weights.
        key_idx = jax.lax.broadcasted_iota(jnp.int32, scores.shape, dimension=2)
        scores = jnp.where(key_idx < actual_sk, scores, jnp.float32(-1e30))

    # Numerically stable softmax over keys, in f32 (VPU/EUP path).
    m = jnp.max(scores, axis=-1, keepdims=True)
    p = jnp.exp(scores - m)
    denom = jnp.sum(p, axis=-1, keepdims=True)
    # Exact reciprocal: denom is only (tb, tq, 1), essentially free, and keeps
    # the user-visible attention_weights summing to 1.
    weights = p * (1.0 / denom)                 # (tb, tq, Sk_pad) f32

    out = jax.lax.dot_general(
        weights.astype(mxu_dtype), v,
        dimension_numbers=(((2,), (1,)), ((0,), (0,))),
        preferred_element_type=jnp.float32)     # (tb, tq, H) f32

    o_ref[...] = out.astype(o_ref.dtype)
    w_ref[...] = weights.astype(w_ref.dtype)


def _vmem_budgets():
    """Generation-aware (VMEM-capacity-aware) budgets.

    Returns (vmem_limit_bytes, per_step_budget_bytes)."""
    cap = None
    try:
        info = pltpu.get_tpu_info()
        cap = getattr(info, "vmem_capacity_bytes", None)
    except Exception:
        cap = None
    if not cap or cap <= 0:
        cap = 64 * 1024 * 1024                  # conservative (v7x physical)

    # Leave headroom for Mosaic's internal scratch / spill space.
    vmem_limit = min(cap - 16 * 1024 * 1024, int(cap * 0.8))
    vmem_limit = max(vmem_limit, 32 * 1024 * 1024)
    # Per-step footprint (double-buffered windows + intermediates) target.
    step_budget = min(vmem_limit // 2, 32 * 1024 * 1024)
    return vmem_limit, step_budget


def _pick_block_sizes(B, Sq, sk_pad, H, in_bytes, w_bytes, step_budget):
    """Choose (tb, tq) so the real per-step VMEM footprint (including the f32
    score/exp intermediates) stays within the generation-aware budget."""

    def step_bytes(tb, tq):
        # Double-buffered pipeline windows: q, k, v inputs; out, weights outputs.
        qkv = tb * (tq + 2 * sk_pad) * H * in_bytes
        outs = tb * tq * (H * 4 + sk_pad * w_bytes)
        dbuf = 2 * (qkv + outs)
        # In-kernel intermediates (single copy): f32 scores, f32 exp(p),
        # low-precision copy of P for the MXU, f32 output accumulator.
        interm = tb * tq * (sk_pad * (4 + 4 + in_bytes) + H * 4)
        return dbuf + interm

    # Tiny problems (e.g. the demo shape): a single fused grid step so per-step
    # overhead and tiny tiles don't dominate.
    if step_bytes(B, Sq) <= 4 * 1024 * 1024:
        return B, Sq

    tb = 1
    if Sq <= 128:
        return tb, Sq

    cap_tq = min(Sq, 1024)
    # Prefer q tiles that evenly divide Sq (no wasted padded rows in the last
    # step), then MXU-aligned multiples of 128; largest first, floor of 128.
    div_cands = [t for t in range((cap_tq // 8) * 8, 127, -8) if Sq % t == 0]
    aligned_cands = list(range((cap_tq // 128) * 128, 127, -128))
    for t in div_cands:
        if step_bytes(tb, t) <= step_budget:
            return tb, t
    for t in aligned_cands:
        if step_bytes(tb, t) <= step_budget:
            return tb, t

    # Even tq=128 does not fit (very large Sk): shrink below one MXU tile as a
    # last resort.  TODO(synk): key-tiled flash-style online softmax instead.
    tq = 64
    while tq > 8 and step_bytes(tb, tq) > step_budget:
        tq //= 2
    return tb, max(tq, 8)


def _pad_axis(x, axis, to):
    pad = to - x.shape[axis]
    if pad <= 0:
        return x
    widths = [(0, 0)] * x.ndim
    widths[axis] = (0, pad)
    return jnp.pad(x, widths)


def scaled_dot_product_attention(query, key, value, hidden_size=None, *,
                                 mxu_dtype=jnp.bfloat16,
                                 weights_dtype=jnp.float32):
    """query: [B, Sq, H], key/value: [B, Sk, H]
    -> (attention_output [B, Sq, H] f32, attention_weights [B, Sq, Sk])."""
    B, Sq, H = query.shape
    _, Sk, _ = key.shape
    if hidden_size is None:
        hidden_size = H                 # the module always uses hidden_size == H
    inv_scale = 1.0 / (float(hidden_size) ** 0.5)

    # Lane-dense weights store: pad the key axis up to a multiple of 128,
    # mask in-kernel, slice the (exactly zero) padding off afterwards.
    sk_pad = ((Sk + 127) // 128) * 128

    in_dtype = mxu_dtype if mxu_dtype is not None else query.dtype
    # Fold the softmax scale into Q in f32 (fused with the one-time cast); cast
    # K/V once here so the resident K/V tiles are already in the MXU dtype.
    q_in = (query.astype(jnp.float32) * inv_scale).astype(in_dtype)
    k_in = _pad_axis(key, 1, sk_pad).astype(in_dtype)
    v_in = _pad_axis(value, 1, sk_pad).astype(in_dtype)

    in_bytes = jnp.dtype(in_dtype).itemsize
    w_bytes = jnp.dtype(weights_dtype).itemsize

    vmem_limit, step_budget = _vmem_budgets()
    tb, tq = _pick_block_sizes(B, Sq, sk_pad, H, in_bytes, w_bytes, step_budget)
    grid = (pl.cdiv(B, tb), pl.cdiv(Sq, tq))

    kernel = functools.partial(_sdpa_kernel, actual_sk=Sk, mxu_dtype=in_dtype)

    out_shapes = (
        jax.ShapeDtypeStruct((B, Sq, H), jnp.float32),
        jax.ShapeDtypeStruct((B, Sq, sk_pad), weights_dtype),
    )

    out, weights = pl.pallas_call(
        kernel,
        out_shape=out_shapes,
        grid_spec=pltpu.PrefetchScalarGridSpec(
            num_scalar_prefetch=0,
            grid=grid,
            in_specs=[
                # Query tile walks the (batch, q-tile) grid ...
                pl.BlockSpec((tb, tq, H), lambda b, qi: (b, qi, 0)),
                # ... while K/V index maps ignore qi, so they stay resident in
                # VMEM across the inner q-tile axis (no re-DMA per q tile).
                pl.BlockSpec((tb, sk_pad, H), lambda b, qi: (b, 0, 0)),
                pl.BlockSpec((tb, sk_pad, H), lambda b, qi: (b, 0, 0)),
            ],
            out_specs=[
                pl.BlockSpec((tb, tq, H), lambda b, qi: (b, qi, 0)),
                pl.BlockSpec((tb, tq, sk_pad), lambda b, qi: (b, qi, 0)),
            ],
        ),
        compiler_params=pltpu.CompilerParams(
            dimension_semantics=("parallel", "parallel"),
            vmem_limit_bytes=int(vmem_limit),
        ),
    )(q_in, k_in, v_in)

    if sk_pad != Sk:
        weights = weights[:, :, :Sk]
    return out, weights


def _reference(query, key, value, hidden_size):
    scale = hidden_size ** 0.5
    scores = jnp.einsum("bqh,bkh->bqk", query, key) / scale
    weights = jax.nn.softmax(scores, axis=-1)
    out = jnp.einsum("bqk,bkh->bqh", weights, value)
    return out, weights


if __name__ == "__main__":
    # Shapes implied by the module: hidden_size=128 (SelfAttention q/k/v
    # projections output 128 features); small batch / sequence for the demo.
    B, Sq, Sk, H = 2, 8, 8, 128
    hidden_size = H

    key0 = jax.random.PRNGKey(0)
    kq, kk, kv = jax.random.split(key0, 3)
    query = jax.random.normal(kq, (B, Sq, H), dtype=jnp.float32)
    key_t = jax.random.normal(kk, (B, Sk, H), dtype=jnp.float32)
    value = jax.random.normal(kv, (B, Sk, H), dtype=jnp.float32)

    out, weights = scaled_dot_product_attention(query, key_t, value, hidden_size)
    out = jax.block_until_ready(out)
    weights = jax.block_until_ready(weights)

    assert out.shape == (B, Sq, H) and weights.shape == (B, Sq, Sk)

    ref_out, ref_w = _reference(query, key_t, value, hidden_size)
    # bf16 MXU inputs (f32 accumulation) introduce ~1e-3 relative error vs the
    # pure-f32 reference; tolerance loosened accordingly.
    assert jnp.allclose(out, ref_out, atol=3e-2, rtol=3e-2), "output mismatch"
    assert jnp.allclose(weights, ref_w, atol=3e-2, rtol=3e-2), "weights mismatch"

    print("KERNEL_OK")
</pallas_src>

<mosaic_0001>
module attributes {stable_mosaic.version = 11 : i64} {
  func.func @_sdpa_kernel(%arg0: i32, %arg1: i32, %arg2: memref<2x8x128xbf16, #tpu.memory_space<vmem>>, %arg3: memref<2x128x128xbf16, #tpu.memory_space<vmem>>, %arg4: memref<2x128x128xbf16, #tpu.memory_space<vmem>>, %arg5: memref<2x8x128xf32, #tpu.memory_space<vmem>>, %arg6: memref<2x8x128xf32, #tpu.memory_space<vmem>>) attributes {dimension_semantics = [#tpu.dimension_semantics<parallel>, #tpu.dimension_semantics<parallel>], iteration_bounds = array<i64: 1, 1>, scalar_prefetch = 0 : i64, scratch_operands = 0 : i64, tpu.core_type = #tpu.core_type<tc>, window_params = [{transform_indices = @transform_0, window_bounds = array<i64: 2, 8, 128>}, {transform_indices = @transform_1, window_bounds = array<i64: 2, 128, 128>}, {transform_indices = @transform_2, window_bounds = array<i64: 2, 128, 128>}, {transform_indices = @transform_3, window_bounds = array<i64: 2, 8, 128>}, {transform_indices = @transform_4, window_bounds = array<i64: 2, 8, 128>}]} {
    %c0 = arith.constant 0 : index
    %c0_0 = arith.constant 0 : index
    %c0_1 = arith.constant 0 : index
    %0 = vector.load %arg2[%c0, %c0_0, %c0_1] : memref<2x8x128xbf16, #tpu.memory_space<vmem>>, vector<2x8x128xbf16>
    %c0_2 = arith.constant 0 : index
    %c0_3 = arith.constant 0 : index
    %c0_4 = arith.constant 0 : index
    %1 = vector.load %arg3[%c0_2, %c0_3, %c0_4] : memref<2x128x128xbf16, #tpu.memory_space<vmem>>, vector<2x128x128xbf16>
    %c0_5 = arith.constant 0 : index
    %c0_6 = arith.constant 0 : index
    %c0_7 = arith.constant 0 : index
    %2 = vector.load %arg4[%c0_5, %c0_6, %c0_7] : memref<2x128x128xbf16, #tpu.memory_space<vmem>>, vector<2x128x128xbf16>
    %cst = arith.constant dense<0.000000e+00> : vector<2x8x128xf32>
    %3 = tpu.matmul %0, %1, %cst {dimension_numbers = #tpu.dot_dimension_numbers<[2], [2], [1], [1], [0, 0, 0, 1, 1, 1], [0], [0]>} : vector<2x8x128xbf16>, vector<2x128x128xbf16>, vector<2x8x128xf32> -> vector<2x8x128xf32>
    %4 = tpu.iota {dimensions = array<i32: 2>} : vector<2x8x128xi32>
    %c8_i32 = arith.constant 8 : i32
    %5 = vector.broadcast %c8_i32 : i32 to vector<2x8x128xi32>
    %6 = arith.cmpi slt, %4, %5 : vector<2x8x128xi32>
    %cst_8 = arith.constant -1.000000e+30 : f32
    %7 = vector.broadcast %cst_8 : f32 to vector<2x8x128xf32>
    %8 = arith.select %6, %3, %7 : vector<2x8x128xi1>, vector<2x8x128xf32>
    %cst_9 = arith.constant dense<0xFF800000> : vector<2x8xf32>
    %9 = vector.multi_reduction <maximumf>, %8, %cst_9 [2] : vector<2x8x128xf32> to vector<2x8xf32>
    %10 = vector.shape_cast %9 : vector<2x8xf32> to vector<2x8x1xf32>
    %11 = vector.broadcast %10 : vector<2x8x1xf32> to vector<2x8x128xf32>
    %12 = arith.subf %8, %11 : vector<2x8x128xf32>
    %13 = math.exp %12 : vector<2x8x128xf32>
    %cst_10 = arith.constant dense<0.000000e+00> : vector<2x8xf32>
    %14 = vector.multi_reduction <add>, %13, %cst_10 [2] : vector<2x8x128xf32> to vector<2x8xf32>
    %15 = vector.shape_cast %14 : vector<2x8xf32> to vector<2x8x1xf32>
    %cst_11 = arith.constant 1.000000e+00 : f32
    %16 = vector.broadcast %cst_11 : f32 to vector<2x8x1xf32>
    %17 = arith.divf %16, %15 : vector<2x8x1xf32>
    %18 = vector.broadcast %17 : vector<2x8x1xf32> to vector<2x8x128xf32>
    %19 = arith.mulf %13, %18 : vector<2x8x128xf32>
    %20 = arith.truncf %19 : vector<2x8x128xf32> to vector<2x8x128xbf16>
    %cst_12 = arith.constant dense<0.000000e+00> : vector<2x8x128xf32>
    %21 = tpu.matmul %20, %2, %cst_12 {dimension_numbers = #tpu.dot_dimension_numbers<[2], [1], [1], [2], [0, 0, 0, 1, 1, 2], [0], [0]>} : vector<2x8x128xbf16>, vector<2x128x128xbf16>, vector<2x8x128xf32> -> vector<2x8x128xf32>
    %c0_13 = arith.constant 0 : index
    %c0_14 = arith.constant 0 : index
    %c0_15 = arith.constant 0 : index
    %22 = vector.load %arg5[%c0_13, %c0_14, %c0_15] : memref<2x8x128xf32, #tpu.memory_space<vmem>>, vector<2x8x128xf32>
    tpu.vector_store %arg5[%c0_13, %c0_14, %c0_15], %21 {strides = array<i32>} : memref<2x8x128xf32, #tpu.memory_space<vmem>>, vector<2x8x128xf32>,
    %c0_16 = arith.constant 0 : index
    %c0_17 = arith.constant 0 : index
    %c0_18 = arith.constant 0 : index
    %23 = vector.load %arg6[%c0_16, %c0_17, %c0_18] : memref<2x8x128xf32, #tpu.memory_space<vmem>>, vector<2x8x128xf32>
    tpu.vector_store %arg6[%c0_16, %c0_17, %c0_18], %19 {strides = array<i32>} : memref<2x8x128xf32, #tpu.memory_space<vmem>>, vector<2x8x128xf32>,
    return
  }
  func.func @transform_0(%arg0: i32, %arg1: i32) -> (i32, i32, i32) {
    %c0_i32 = arith.constant 0 : i32
    %c0_i32_0 = arith.constant 0 : i32
    return %arg0, %arg1, %c0_i32 : i32, i32, i32
  }
  func.func @transform_1(%arg0: i32, %arg1: i32) -> (i32, i32, i32) {
    %c0_i32 = arith.constant 0 : i32
    %c0_i32_0 = arith.constant 0 : i32
    %c0_i32_1 = arith.constant 0 : i32
    return %arg0, %c0_i32, %c0_i32_0 : i32, i32, i32
  }
  func.func @transform_2(%arg0: i32, %arg1: i32) -> (i32, i32, i32) {
    %c0_i32 = arith.constant 0 : i32
    %c0_i32_0 = arith.constant 0 : i32
    %c0_i32_1 = arith.constant 0 : i32
    return %arg0, %c0_i32, %c0_i32_0 : i32, i32, i32
  }
  func.func @transform_3(%arg0: i32, %arg1: i32) -> (i32, i32, i32) {
    %c0_i32 = arith.constant 0 : i32
    %c0_i32_0 = arith.constant 0 : i32
    return %arg0, %arg1, %c0_i32 : i32, i32, i32
  }
  func.func @transform_4(%arg0: i32, %arg1: i32) -> (i32, i32, i32) {
    %c0_i32 = arith.constant 0 : i32
    %c0_i32_0 = arith.constant 0 : i32
    return %arg0, %arg1, %c0_i32 : i32, i32, i32
  }
}

</mosaic_0001>

<llo_original>
// kernel: tpu_custom_call.1
$region0: #{tpu_custom_call.1}
  #allocation0 [shape = 'u32[]', space=smem, size = 0x4, offset = 0x4, fixed_abs, tag = 'smem constant byte address 0x4 - core index']
  #allocation1 [shape = 'u32[144,128]{1,0:T(1,128)}', space=vmem, size = 0x12000, scoped, tag = 'internal scratch']
  %s0 = inlined_call_operand.hbm [shape: bf16[2,8,128], index: 0, kind: input, shape index: {}]
  %s1 = inlined_call_operand.hbm [shape: bf16[2,128,128], index: 1, kind: input, shape index: {}]
  %s2 = inlined_call_operand.hbm [shape: bf16[2,128,128], index: 2, kind: input, shape index: {}]
  %s3 = inlined_call_operand.hbm [shape: f32[2,8,128], index: 3, kind: output, shape index: {0}]
  %s4 = inlined_call_operand.hbm [shape: f32[2,8,128], index: 4, kind: output, shape index: {1}]
  %5 = xla_tuple %s3, %s4
  %s6 = sld [smem:[#allocation0]]
  $region42: #{tpu_custom_call.1} parent=0
    _
  %s8 = ssub.s32 1, %s6
  %s9 = scalar_select 0, %s8, %s6
  $region1: #{tpu_custom_call.1} parent=0
    #allocation2 [shape = 'u8[4096]{0}', space=vmem, size = 0x1000, scoped, tag = 'input window, operand 0, single buffered']
    #allocation3 [shape = 's32[1]{0}', space=sflag, size = 0x4, scoped, tag = 'scoped memory for tpu_custom_call.1']
    #allocation4 [shape = 's32[1]{0}', space=sflag, size = 0x4, scoped, tag = 'scoped memory for tpu_custom_call.1']
    #allocation5 [shape = 'u8[65536]{0}', space=vmem, size = 0x10000, scoped, tag = 'input window, operand 1, single buffered']
    #allocation6 [shape = 's32[1]{0}', space=sflag, size = 0x4, scoped, tag = 'scoped memory for tpu_custom_call.1']
    #allocation7 [shape = 'u8[65536]{0}', space=vmem, size = 0x10000, scoped, tag = 'input window, operand 2, single buffered']
    #allocation8 [shape = 'u8[8192]{0}', space=vmem, size = 0x2000, scoped, tag = 'output window, operand 0, single buffered']
    #allocation9 [shape = 'u8[8192]{0}', space=vmem, size = 0x2000, scoped, tag = 'output window, operand 1, single buffered']
    #allocation10 [shape = 's32[1]{0}', space=sflag, size = 0x4, scoped, tag = 'scoped memory for tpu_custom_call.1']
    %10 = vsyncpa [#allocation3], 0
    %11 = vsyncpa [#allocation6], 0
    %12 = vsyncpa [#allocation4], 0
    %13 = vsyncpa [#allocation10], 0
    // Predicated region
    $region2: #{tpu_custom_call.1} parent=1 // pred_check
      _
    $region3: #{tpu_custom_call.1} parent=1 // pred_check_branch
      %15 = sbr.rel (0) target = $region5
    $region4: #{tpu_custom_call.1} parent=1 // pred_region
      %s17 = ssub.s32 128, 128
      %18 = vsyncadd [#allocation3], %s17
      %s19 = sshll.u32 [#allocation2], 4
      %s20 = int_to_ptr.vmem [resolvable:$true] %s19
      %25 = dma.hbm_to_vmem [thread:$0]  %s0, 128, %s20, [#allocation3], 64, 64, 4
    $region5: #{tpu_custom_call.1} parent=1 // pred_fallthru
      _
    // Predicated region
    $region6: #{tpu_custom_call.1} parent=1 // pred_check
      _
    $region7: #{tpu_custom_call.1} parent=1 // pred_check_branch
      %27 = sbr.rel (0) target = $region9
    $region8: #{tpu_custom_call.1} parent=1 // pred_region
      %s29 = ssub.s32 2048, 2048
      %30 = vsyncadd [#allocation6], %s29
      %s31 = sshll.u32 [#allocation5], 4
      %s32 = int_to_ptr.vmem [resolvable:$true] %s31
      %37 = dma.hbm_to_vmem [thread:$0]  %s1, 2048, %s32, [#allocation6], 64, 64, 4
    $region9: #{tpu_custom_call.1} parent=1 // pred_fallthru
      _
    // Predicated region
    $region10: #{tpu_custom_call.1} parent=1 // pred_check
      _
    $region11: #{tpu_custom_call.1} parent=1 // pred_check_branch
      %39 = sbr.rel (0) target = $region13
    $region12: #{tpu_custom_call.1} parent=1 // pred_region
      %s41 = ssub.s32 2048, 2048
      %42 = vsyncadd [#allocation6], %s41
      %s43 = sshll.u32 [#allocation7], 4
      %s44 = int_to_ptr.vmem [resolvable:$true] %s43
      %49 = dma.hbm_to_vmem [thread:$0]  %s2, 2048, %s44, [#allocation6], 64, 64, 4
    $region13: #{tpu_custom_call.1} parent=1 // pred_fallthru
      _
    // Predicated region
    $region14: #{tpu_custom_call.1} parent=1 // pred_check
      _
    $region15: #{tpu_custom_call.1} parent=1 // pred_check_branch
      %51 = sbr.rel (0) target = $region17
    $region16: #{tpu_custom_call.1} parent=1 // pred_region
      %52 = dma.done [#allocation3], 128
    $region17: #{tpu_custom_call.1} parent=1 // pred_fallthru
      _
    // Predicated region
    $region18: #{tpu_custom_call.1} parent=1 // pred_check
      _
    $region19: #{tpu_custom_call.1} parent=1 // pred_check_branch
      %54 = sbr.rel (0) target = $region21
    $region20: #{tpu_custom_call.1} parent=1 // pred_region
      %55 = dma.done [#allocation6], 2048
    $region21: #{tpu_custom_call.1} parent=1 // pred_fallthru
      _
    // Predicated region
    $region22: #{tpu_custom_call.1} parent=1 // pred_check
      _
    $region23: #{tpu_custom_call.1} parent=1 // pred_check_branch
      %57 = sbr.rel (0) target = $region25
    $region24: #{tpu_custom_call.1} parent=1 // pred_region
      %58 = dma.done [#allocation6], 2048
    $region25: #{tpu_custom_call.1} parent=1 // pred_fallthru
      _
    %v60 = vld [vmem:[#allocation2] sm:$0xf]
    %v61 = vld [vmem:[#allocation2 + $0x4] sm:$0xf]
    %v62 = vld [vmem:[#allocation5] sm:$0xf]
    %v63 = vld [vmem:[#allocation5 + $0x4] sm:$0xf]
    %v64 = vld [vmem:[#allocation5 + $0x8] sm:$0xf]
    %v65 = vld [vmem:[#allocation5 + $0xc] sm:$0xf]
    %v66 = vld [vmem:[#allocation5 + $0x10] sm:$0xf]
    %v67 = vld [vmem:[#allocation5 + $0x14] sm:$0xf]
    %v68 = vld [vmem:[#allocation5 + $0x18] sm:$0xf]
    %v69 = vld [vmem:[#allocation5 + $0x1c] sm:$0xf]
    %v70 = vld [vmem:[#allocation5 + $0x20] sm:$0xf]
    %v71 = vld [vmem:[#allocation5 + $0x24] sm:$0xf]
    %v72 = vld [vmem:[#allocation5 + $0x28] sm:$0xf]
    %v73 = vld [vmem:[#allocation5 + $0x2c] sm:$0xf]
    %v74 = vld [vmem:[#allocation5 + $0x30] sm:$0xf]
    %v75 = vld [vmem:[#allocation5 + $0x34] sm:$0xf]
    %v76 = vld [vmem:[#allocation5 + $0x38] sm:$0xf]
    %v77 = vld [vmem:[#allocation5 + $0x3c] sm:$0xf]
    %v78 = vld [vmem:[#allocation5 + $0x40] sm:$0xf]
    %v79 = vld [vmem:[#allocation5 + $0x44] sm:$0xf]
    %v80 = vld [vmem:[#allocation5 + $0x48] sm:$0xf]
    %v81 = vld [vmem:[#allocation5 + $0x4c] sm:$0xf]
    %v82 = vld [vmem:[#allocation5 + $0x50] sm:$0xf]
    %v83 = vld [vmem:[#allocation5 + $0x54] sm:$0xf]
    %v84 = vld [vmem:[#allocation5 + $0x58] sm:$0xf]
    %v85 = vld [vmem:[#allocation5 + $0x5c] sm:$0xf]
    %v86 = vld [vmem:[#allocation5 + $0x60] sm:$0xf]
    %v87 = vld [vmem:[#allocation5 + $0x64] sm:$0xf]
    %v88 = vld [vmem:[#allocation5 + $0x68] sm:$0xf]
    %v89 = vld [vmem:[#allocation5 + $0x6c] sm:$0xf]
    %v90 = vld [vmem:[#allocation5 + $0x70] sm:$0xf]
    %v91 = vld [vmem:[#allocation5 + $0x74] sm:$0xf]
    %v92 = vld [vmem:[#allocation5 + $0x78] sm:$0xf]
    %v93 = vld [vmem:[#allocation5 + $0x7c] sm:$0xf]
    %v94 = vld [vmem:[#allocation7] sm:$0xf]
    %v95 = vld [vmem:[#allocation7 + $0x4] sm:$0xf]
    %v96 = vld [vmem:[#allocation7 + $0x8] sm:$0xf]
    %v97 = vld [vmem:[#allocation7 + $0xc] sm:$0xf]
    %v98 = vld [vmem:[#allocation7 + $0x10] sm:$0xf]
    %v99 = vld [vmem:[#allocation7 + $0x14] sm:$0xf]
    %v100 = vld [vmem:[#allocation7 + $0x18] sm:$0xf]
    %v101 = vld [vmem:[#allocation7 + $0x1c] sm:$0xf]
    %v102 = vld [vmem:[#allocation7 + $0x20] sm:$0xf]
    %v103 = vld [vmem:[#allocation7 + $0x24] sm:$0xf]
    %v104 = vld [vmem:[#allocation7 + $0x28] sm:$0xf]
    %v105 = vld [vmem:[#allocation7 + $0x2c] sm:$0xf]
    %v106 = vld [vmem:[#allocation7 + $0x30] sm:$0xf]
    %v107 = vld [vmem:[#allocation7 + $0x34] sm:$0xf]
    %v108 = vld [vmem:[#allocation7 + $0x38] sm:$0xf]
    %v109 = vld [vmem:[#allocation7 + $0x3c] sm:$0xf]
    %v110 = vld [vmem:[#allocation7 + $0x40] sm:$0xf]
    %v111 = vld [vmem:[#allocation7 + $0x44] sm:$0xf]
    %v112 = vld [vmem:[#allocation7 + $0x48] sm:$0xf]
    %v113 = vld [vmem:[#allocation7 + $0x4c] sm:$0xf]
    %v114 = vld [vmem:[#allocation7 + $0x50] sm:$0xf]
    %v115 = vld [vmem:[#allocation7 + $0x54] sm:$0xf]
    %v116 = vld [vmem:[#allocation7 + $0x58] sm:$0xf]
    %v117 = vld [vmem:[#allocation7 + $0x5c] sm:$0xf]
    %v118 = vld [vmem:[#allocation7 + $0x60] sm:$0xf]
    %v119 = vld [vmem:[#allocation7 + $0x64] sm:$0xf]
    %v120 = vld [vmem:[#allocation7 + $0x68] sm:$0xf]
    %v121 = vld [vmem:[#allocation7 + $0x6c] sm:$0xf]
    %v122 = vld [vmem:[#allocation7 + $0x70] sm:$0xf]
    %v123 = vld [vmem:[#allocation7 + $0x74] sm:$0xf]
    %v124 = vld [vmem:[#allocation7 + $0x78] sm:$0xf]
    %v125 = vld [vmem:[#allocation7 + $0x7c] sm:$0xf]
    %v142 = vunpack.c.l.b16 %v62
    %v143 = vunpack.c.l.b16 %v63
    %v144 = vunpack.c.l.b16 %v64
    %v145 = vunpack.c.l.b16 %v65
    %v146 = vunpack.c.l.b16 %v66
    %v147 = vunpack.c.l.b16 %v67
    %v148 = vunpack.c.l.b16 %v68
    %v149 = vunpack.c.l.b16 %v69
    %v150 = vunpack.c.l.b16 %v70
    %v151 = vunpack.c.l.b16 %v71
    %v152 = vunpack.c.l.b16 %v72
    %v153 = vunpack.c.l.b16 %v73
    %v154 = vunpack.c.l.b16 %v74
    %v155 = vunpack.c.l.b16 %v75
    %v156 = vunpack.c.l.b16 %v76
    %v157 = vunpack.c.l.b16 %v77
    %v158 = vpack.c.b16 %v143, %v142
    %v159 = vpack.c.b16 %v145, %v144
    %v160 = vpack.c.b16 %v147, %v146
    %v161 = vpack.c.b16 %v149, %v148
    %v162 = vpack.c.b16 %v151, %v150
    %v163 = vpack.c.b16 %v153, %v152
    %v164 = vpack.c.b16 %v155, %v154
    %v165 = vpack.c.b16 %v157, %v156
    %174 = vmatprep.subr.bf16.mxu0 0
    %175 = vmatpush1.bf16.xpose.msra.mxu0 %v158
    %176 = vmatprep.subr.bf16.mxu0 0
    %177 = vmatpush1.bf16.xpose.msra.mxu0 %v159
    %178 = vmatprep.subr.bf16.mxu0 0
    %179 = vmatpush1.bf16.xpose.msra.mxu0 %v160
    %180 = vmatprep.subr.bf16.mxu0 0
    %181 = vmatpush1.bf16.xpose.msra.mxu0 %v161
    %182 = vmatprep.subr.bf16.mxu0 0
    %183 = vmatpush1.bf16.xpose.msra.mxu0 %v162
    %184 = vmatprep.subr.bf16.mxu0 0
    %185 = vmatpush1.bf16.xpose.msra.mxu0 %v163
    %186 = vmatprep.subr.bf16.mxu0 0
    %187 = vmatpush1.bf16.xpose.msra.mxu0 %v164
    %188 = vmatprep.subr.bf16.mxu0 0
    %189 = vmatpush1.bf16.xpose.msra.mxu0 %v165
    %190 = vmatprep.subr.bf16.mxu0 0
    %191 = vmatpush1.bf16.xpose.msra.mxu0 0
    %192 = vmatprep.subr.bf16.mxu0 0
    %193 = vmatpush1.bf16.xpose.msra.mxu0 0
    %194 = vmatprep.subr.bf16.mxu0 0
    %195 = vmatpush1.bf16.xpose.msra.mxu0 0
    %196 = vmatprep.subr.bf16.mxu0 0
    %197 = vmatpush1.bf16.xpose.msra.mxu0 0
    %198 = vmatprep.subr.bf16.mxu0 0
    %199 = vmatpush1.bf16.xpose.msra.mxu0 0
    %200 = vmatprep.subr.bf16.mxu0 0
    %201 = vmatpush1.bf16.xpose.msra.mxu0 0
    %202 = vmatprep.subr.bf16.mxu0 0
    %203 = vmatpush1.bf16.xpose.msra.mxu0 0
    %204 = vmatprep.subr.bf16.mxu0 0
    %205 = vmatpush1.bf16.xpose.msra.mxu0 0
    %206 = vmatprep.mubr.bf16.mxu0 0
    %207 = vmatmul.mubr.bf16.gmra.mrb[0].mxu0 %v60
    %v208 = vpop.f32.mrb[0].mxu0
    %v209 = vadd.f32 0.0, %v208
    %v210 = vpop.f32.mrb[0].mxu0
    %v211 = vpop.f32.mrb[0].mxu0
    %v212 = vpop.f32.mrb[0].mxu0
    %213 = vdwg.mxu0
    %v230 = vunpack.c.l.b16 %v78
    %v231 = vunpack.c.l.b16 %v79
    %v232 = vunpack.c.l.b16 %v80
    %v233 = vunpack.c.l.b16 %v81
    %v234 = vunpack.c.l.b16 %v82
    %v235 = vunpack.c.l.b16 %v83
    %v236 = vunpack.c.l.b16 %v84
    %v237 = vunpack.c.l.b16 %v85
    %v238 = vunpack.c.l.b16 %v86
    %v239 = vunpack.c.l.b16 %v87
    %v240 = vunpack.c.l.b16 %v88
    %v241 = vunpack.c.l.b16 %v89
    %v242 = vunpack.c.l.b16 %v90
    %v243 = vunpack.c.l.b16 %v91
    %v244 = vunpack.c.l.b16 %v92
    %v245 = vunpack.c.l.b16 %v93
    %v246 = vpack.c.b16 %v231, %v230
    %v247 = vpack.c.b16 %v233, %v232
    %v248 = vpack.c.b16 %v235, %v234
    %v249 = vpack.c.b16 %v237, %v236
    %v250 = vpack.c.b16 %v239, %v238
    %v251 = vpack.c.b16 %v241, %v240
    %v252 = vpack.c.b16 %v243, %v242
    %v253 = vpack.c.b16 %v245, %v244
    %262 = vmatprep.subr.bf16.mxu0 0
    %263 = vmatpush1.bf16.xpose.msra.mxu0 %v246
    %264 = vmatprep.subr.bf16.mxu0 0
    %265 = vmatpush1.bf16.xpose.msra.mxu0 %v247
    %266 = vmatprep.subr.bf16.mxu0 0
    %267 = vmatpush1.bf16.xpose.msra.mxu0 %v248
    %268 = vmatprep.subr.bf16.mxu0 0
    %269 = vmatpush1.bf16.xpose.msra.mxu0 %v249
    %270 = vmatprep.subr.bf16.mxu0 0
    %271 = vmatpush1.bf16.xpose.msra.mxu0 %v250
    %272 = vmatprep.subr.bf16.mxu0 0
    %273 = vmatpush1.bf16.xpose.msra.mxu0 %v251
    %274 = vmatprep.subr.bf16.mxu0 0
    %275 = vmatpush1.bf16.xpose.msra.mxu0 %v252
    %276 = vmatprep.subr.bf16.mxu0 0
    %277 = vmatpush1.bf16.xpose.msra.mxu0 %v253
    %278 = vmatprep.subr.bf16.mxu0 0
    %279 = vmatpush1.bf16.xpose.msra.mxu0 0
    %280 = vmatprep.subr.bf16.mxu0 0
    %281 = vmatpush1.bf16.xpose.msra.mxu0 0
    %282 = vmatprep.subr.bf16.mxu0 0
    %283 = vmatpush1.bf16.xpose.msra.mxu0 0
    %284 = vmatprep.subr.bf16.mxu0 0
    %285 = vmatpush1.bf16.xpose.msra.mxu0 0
    %286 = vmatprep.subr.bf16.mxu0 0
    %287 = vmatpush1.bf16.xpose.msra.mxu0 0
    %288 = vmatprep.subr.bf16.mxu0 0
    %289 = vmatpush1.bf16.xpose.msra.mxu0 0
    %290 = vmatprep.subr.bf16.mxu0 0
    %291 = vmatpush1.bf16.xpose.msra.mxu0 0
    %292 = vmatprep.subr.bf16.mxu0 0
    %293 = vmatpush1.bf16.xpose.msra.mxu0 0
    %294 = vmatprep.mubr.bf16.mxu0 0
    %295 = vmatmul.mubr.bf16.gmra.mrb[0].mxu0 %v61
    %v296 = vpop.f32.mrb[0].mxu0
    %v297 = vadd.f32 0.0, %v296
    %v298 = vpop.f32.mrb[0].mxu0
    %v299 = vpop.f32.mrb[0].mxu0
    %v300 = vpop.f32.mrb[0].mxu0
    %301 = vdwg.mxu0
    %v302 = vlaneseq
    %v303 = vand.u32 %v302, 127
    %vm304 = vcmp.lt.s32.totalorder %v303, 8
    %v305 = vsel %vm304, %v209, -1e+30
    %v306 = vsel %vm304, %v297, -1e+30
    %307 = vmax.xlane.f32.xlu0 %v305
    %v308 = vpop.xlane.xlu0 %307
    %309 = vmax.xlane.f32.xlu0 %v306
    %v310 = vpop.xlane.xlu0 %309
    %v311 = vsub.f32 %v305, %v308
    %v312 = vsub.f32 %v306, %v310
    %v313 = vmul.f32 %v311, 1.442695
    %v314 = vpow.pop %v313
    %v315 = vmul.f32 %v312, 1.442695
    %v316 = vpow.pop %v315
    %317 = vadd.xlane.f32.xlu0 %v314
    %v318 = vpop.xlane.xlu0 %317
    %319 = vadd.xlane.f32.xlu0 %v316
    %v320 = vpop.xlane.xlu0 %319
    %v321 = vrcp.pop %v318
    %v322 = vmul.f32 1.0, %v321
    %v323 = vrcp.pop %v320
    %v324 = vmul.f32 1.0, %v323
    %v325 = vmul.f32 %v314, %v322
    %v326 = vmul.f32 %v316, %v324
    %v327 = vpack.c.bf16 %v325, %v325
    %v328 = vpack.c.bf16 %v326, %v326
    %v345 = vunpack.c.l.b16 %v94
    %v346 = vunpack.c.l.b16 %v95
    %v347 = vunpack.c.l.b16 %v96
    %v348 = vunpack.c.l.b16 %v97
    %v349 = vunpack.c.l.b16 %v98
    %v350 = vunpack.c.l.b16 %v99
    %v351 = vunpack.c.l.b16 %v100
    %v352 = vunpack.c.l.b16 %v101
    %v353 = vunpack.c.l.b16 %v102
    %v354 = vunpack.c.l.b16 %v103
    %v355 = vunpack.c.l.b16 %v104
    %v356 = vunpack.c.l.b16 %v105
    %v357 = vunpack.c.l.b16 %v106
    %v358 = vunpack.c.l.b16 %v107
    %v359 = vunpack.c.l.b16 %v108
    %v360 = vunpack.c.l.b16 %v109
    %v361 = vpack.c.b16 %v346, %v345
    %v362 = vpack.c.b16 %v348, %v347
    %v363 = vpack.c.b16 %v350, %v349
    %v364 = vpack.c.b16 %v352, %v351
    %v365 = vpack.c.b16 %v354, %v353
    %v366 = vpack.c.b16 %v356, %v355
    %v367 = vpack.c.b16 %v358, %v357
    %v368 = vpack.c.b16 %v360, %v359
    %377 = vmatprep.subr.bf16.mxu0 0
    %378 = vmatpush1.bf16.msra.mxu0 %v361
    %379 = vmatprep.subr.bf16.mxu0 0
    %380 = vmatpush1.bf16.msra.mxu0 %v362
    %381 = vmatprep.subr.bf16.mxu0 0
    %382 = vmatpush1.bf16.msra.mxu0 %v363
    %383 = vmatprep.subr.bf16.mxu0 0
    %384 = vmatpush1.bf16.msra.mxu0 %v364
    %385 = vmatprep.subr.bf16.mxu0 0
    %386 = vmatpush1.bf16.msra.mxu0 %v365
    %387 = vmatprep.subr.bf16.mxu0 0
    %388 = vmatpush1.bf16.msra.mxu0 %v366
    %389 = vmatprep.subr.bf16.mxu0 0
    %390 = vmatpush1.bf16.msra.mxu0 %v367
    %391 = vmatprep.subr.bf16.mxu0 0
    %392 = vmatpush1.bf16.msra.mxu0 %v368
    %393 = vmatprep.subr.bf16.mxu0 0
    %394 = vmatpush1.bf16.msra.mxu0 0
    %395 = vmatprep.subr.bf16.mxu0 0
    %396 = vmatpush1.bf16.msra.mxu0 0
    %397 = vmatprep.subr.bf16.mxu0 0
    %398 = vmatpush1.bf16.msra.mxu0 0
    %399 = vmatprep.subr.bf16.mxu0 0
    %400 = vmatpush1.bf16.msra.mxu0 0
    %401 = vmatprep.subr.bf16.mxu0 0
    %402 = vmatpush1.bf16.msra.mxu0 0
    %403 = vmatprep.subr.bf16.mxu0 0
    %404 = vmatpush1.bf16.msra.mxu0 0
    %405 = vmatprep.subr.bf16.mxu0 0
    %406 = vmatpush1.bf16.msra.mxu0 0
    %407 = vmatprep.subr.bf16.mxu0 0
    %408 = vmatpush1.bf16.msra.mxu0 0
    %409 = vmatprep.mubr.bf16.mxu0 0
    %410 = vmatmul.mubr.bf16.gmra.mrb[0].mxu0 %v327
    %v411 = vpop.f32.mrb[0].mxu0
    %v412 = vadd.f32 0.0, %v411
    %v413 = vpop.f32.mrb[0].mxu0
    %v414 = vpop.f32.mrb[0].mxu0
    %v415 = vpop.f32.mrb[0].mxu0
    %416 = vdwg.mxu0
    %v433 = vunpack.c.l.b16 %v110
    %v434 = vunpack.c.l.b16 %v111
    %v435 = vunpack.c.l.b16 %v112
    %v436 = vunpack.c.l.b16 %v113
    %v437 = vunpack.c.l.b16 %v114
    %v438 = vunpack.c.l.b16 %v115
    %v439 = vunpack.c.l.b16 %v116
    %v440 = vunpack.c.l.b16 %v117
    %v441 = vunpack.c.l.b16 %v118
    %v442 = vunpack.c.l.b16 %v119
    %v443 = vunpack.c.l.b16 %v120
    %v444 = vunpack.c.l.b16 %v121
    %v445 = vunpack.c.l.b16 %v122
    %v446 = vunpack.c.l.b16 %v123
    %v447 = vunpack.c.l.b16 %v124
    %v448 = vunpack.c.l.b16 %v125
    %v449 = vpack.c.b16 %v434, %v433
    %v450 = vpack.c.b16 %v436, %v435
    %v451 = vpack.c.b16 %v438, %v437
    %v452 = vpack.c.b16 %v440, %v439
    %v453 = vpack.c.b16 %v442, %v441
    %v454 = vpack.c.b16 %v444, %v443
    %v455 = vpack.c.b16 %v446, %v445
    %v456 = vpack.c.b16 %v448, %v447
    %465 = vmatprep.subr.bf16.mxu0 0
    %466 = vmatpush1.bf16.msra.mxu0 %v449
    %467 = vmatprep.subr.bf16.mxu0 0
    %468 = vmatpush1.bf16.msra.mxu0 %v450
    %469 = vmatprep.subr.bf16.mxu0 0
    %470 = vmatpush1.bf16.msra.mxu0 %v451
    %471 = vmatprep.subr.bf16.mxu0 0
    %472 = vmatpush1.bf16.msra.mxu0 %v452
    %473 = vmatprep.subr.bf16.mxu0 0
    %474 = vmatpush1.bf16.msra.mxu0 %v453
    %475 = vmatprep.subr.bf16.mxu0 0
    %476 = vmatpush1.bf16.msra.mxu0 %v454
    %477 = vmatprep.subr.bf16.mxu0 0
    %478 = vmatpush1.bf16.msra.mxu0 %v455
    %479 = vmatprep.subr.bf16.mxu0 0
    %480 = vmatpush1.bf16.msra.mxu0 %v456
    %481 = vmatprep.subr.bf16.mxu0 0
    %482 = vmatpush1.bf16.msra.mxu0 0
    %483 = vmatprep.subr.bf16.mxu0 0
    %484 = vmatpush1.bf16.msra.mxu0 0
    %485 = vmatprep.subr.bf16.mxu0 0
    %486 = vmatpush1.bf16.msra.mxu0 0
    %487 = vmatprep.subr.bf16.mxu0 0
    %488 = vmatpush1.bf16.msra.mxu0 0
    %489 = vmatprep.subr.bf16.mxu0 0
    %490 = vmatpush1.bf16.msra.mxu0 0
    %491 = vmatprep.subr.bf16.mxu0 0
    %492 = vmatpush1.bf16.msra.mxu0 0
    %493 = vmatprep.subr.bf16.mxu0 0
    %494 = vmatpush1.bf16.msra.mxu0 0
    %495 = vmatprep.subr.bf16.mxu0 0
    %496 = vmatpush1.bf16.msra.mxu0 0
    %497 = vmatprep.mubr.bf16.mxu0 0
    %498 = vmatmul.mubr.bf16.gmra.mrb[0].mxu0 %v328
    %v499 = vpop.f32.mrb[0].mxu0
    %v500 = vadd.f32 0.0, %v499
    %v501 = vpop.f32.mrb[0].mxu0
    %v502 = vpop.f32.mrb[0].mxu0
    %v503 = vpop.f32.mrb[0].mxu0
    %504 = vdwg.mxu0
    %505 = vst [vmem:[#allocation8] sm:$0xff] %v412
    %506 = vst [vmem:[#allocation8 + $0x8] sm:$0xff] %v500
    %507 = vst [vmem:[#allocation9] sm:$0xff] %v325
    %508 = vst [vmem:[#allocation9 + $0x8] sm:$0xff] %v326
    // Predicated region
    $region26: #{tpu_custom_call.1} parent=1 // pred_check
      _
    $region27: #{tpu_custom_call.1} parent=1 // pred_check_branch
      %510 = sbr.rel (0) target = $region29
    $region28: #{tpu_custom_call.1} parent=1 // pred_region
      %s512 = ssub.s32 256, 256
      %513 = vsyncadd [#allocation4], %s512
      %s514 = sshll.u32 [#allocation8], 4
      %s515 = int_to_ptr.vmem [resolvable:$true] %s514
      %520 = dma.vmem_to_hbm [thread:$0]  %s515, 256, %s3, [#allocation4], 128, 128, 8
    $region29: #{tpu_custom_call.1} parent=1 // pred_fallthru
      _
    // Predicated region
    $region30: #{tpu_custom_call.1} parent=1 // pred_check
      _
    $region31: #{tpu_custom_call.1} parent=1 // pred_check_branch
      %522 = sbr.rel (0) target = $region33
    $region32: #{tpu_custom_call.1} parent=1 // pred_region
      %s524 = ssub.s32 256, 256
      %525 = vsyncadd [#allocation10], %s524
      %s526 = sshll.u32 [#allocation9], 4
      %s527 = int_to_ptr.vmem [resolvable:$true] %s526
      %532 = dma.vmem_to_hbm [thread:$0]  %s527, 256, %s4, [#allocation10], 128, 128, 8
    $region33: #{tpu_custom_call.1} parent=1 // pred_fallthru
      _
    // Predicated region
    $region34: #{tpu_custom_call.1} parent=1 // pred_check
      _
    $region35: #{tpu_custom_call.1} parent=1 // pred_check_branch
      %534 = sbr.rel (0) target = $region37
    $region36: #{tpu_custom_call.1} parent=1 // pred_region
      %535 = dma.done [#allocation4], 256
    $region37: #{tpu_custom_call.1} parent=1 // pred_fallthru
      _
    // Predicated region
    $region38: #{tpu_custom_call.1} parent=1 // pred_check
      _
    $region39: #{tpu_custom_call.1} parent=1 // pred_check_branch
      %537 = sbr.rel (0) target = $region41
    $region40: #{tpu_custom_call.1} parent=1 // pred_region
      %538 = dma.done [#allocation10], 256
    $region41: #{tpu_custom_call.1} parent=1 // pred_fallthru
      _
    %539 = vsyncpa [#allocation3], 1
    %540 = vsyncpa [#allocation6], 1
    %541 = vsyncpa [#allocation4], 1
    %542 = vsyncpa [#allocation10], 1

</llo_original>
